<compile_context>
chip_gen: v7x
topology: tpu7x:2x2x1
jax: 0.10.0
libtpu: 0.0.40
codegen_flags: <defaults>
</compile_context>

<pallas_src>
import functools

import jax
import jax.numpy as jnp
from jax import lax
from jax.experimental import pallas as pl
from jax.experimental.pallas import tpu as pltpu


def _instance_norm_kernel(x_ref, scale_ref, shift_ref, o_ref, *, eps, inv_n):
    # x_ref block: (rblk, HW); scale/shift blocks: (rblk, 1)
    x = x_ref[...].astype(jnp.float32)                 # (rblk, HW)
    scale = scale_ref[...].astype(jnp.float32)         # (rblk, 1)
    shift = shift_ref[...].astype(jnp.float32)         # (rblk, 1)

    # Single-sweep statistics (fp32 accumulation): var = E[x^2] - mean^2.
    s1 = jnp.sum(x, axis=-1, keepdims=True)            # (rblk, 1)
    s2 = jnp.sum(x * x, axis=-1, keepdims=True)        # (rblk, 1)
    mean = s1 * inv_n
    var = jnp.maximum(s2 * inv_n - mean * mean, 0.0)   # guard tiny cancellation

    inv_std = lax.rsqrt(var + eps)                     # EUP op (separate VLIW slot)

    # Fold scale/shift so the big elementwise pass is a single mul+add.
    a = scale * inv_std                                # (rblk, 1)
    b = shift - mean * a                               # (rblk, 1)
    o_ref[...] = (x * a + b).astype(o_ref.dtype)


def _vmem_capacity_bytes():
    try:
        return int(pltpu.get_tpu_info().vmem_capacity_bytes)
    except Exception:
        return 64 * 1024 * 1024  # conservative (v7x per-TensorCore)


def instance_normalization(x, scale, shift, eps=1e-9):
    """x: (N, C, H, W); scale, shift: (C,). Matches the PyTorch forward."""
    N, C, H, W = x.shape
    HW = H * W
    rows = N * C

    x_flat = x.reshape(rows, HW)
    # Per-row (i.e. per (n, c)) scale/shift columns; tiny O(N*C) arrays.
    scale_rows = jnp.broadcast_to(scale[None, :], (N, C)).reshape(rows, 1)
    shift_rows = jnp.broadcast_to(shift[None, :], (N, C)).reshape(rows, 1)

    # Generation-aware row-block size: keep the double-buffered in+out tiles
    # (4 * tile_bytes) at ~1/4 of physical VMEM, capped at 8 MiB per tile.
    vmem_cap = _vmem_capacity_bytes()
    target_tile_bytes = min(vmem_cap // 16, 8 * 1024 * 1024)
    bytes_per_row = HW * 4  # fp32 work dtype
    rblk = max(1, target_tile_bytes // bytes_per_row)
    rblk = max(8, (rblk // 8) * 8)        # sublane multiple of 8
    if rblk >= rows:
        rblk = rows                        # full-extent block is always legal
    grid = (pl.cdiv(rows, rblk),)

    tile_bytes = rblk * bytes_per_row
    vmem_limit = int(min(vmem_cap // 2,
                         max(4 * tile_bytes + (4 << 20), 16 << 20)))

    kernel = functools.partial(
        _instance_norm_kernel, eps=float(eps), inv_n=1.0 / float(HW))

    out_flat = pl.pallas_call(
        kernel,
        out_shape=jax.ShapeDtypeStruct((rows, HW), x.dtype),
        grid_spec=pltpu.PrefetchScalarGridSpec(
            num_scalar_prefetch=0,
            grid=grid,
            in_specs=[
                pl.BlockSpec((rblk, HW), lambda r: (r, 0)),
                pl.BlockSpec((rblk, 1), lambda r: (r, 0)),
                pl.BlockSpec((rblk, 1), lambda r: (r, 0)),
            ],
            out_specs=pl.BlockSpec((rblk, HW), lambda r: (r, 0)),
        ),
        compiler_params=pltpu.CompilerParams(
            dimension_semantics=("parallel",),
            vmem_limit_bytes=vmem_limit,
        ),
    )(x_flat, scale_rows, shift_rows)

    return out_flat.reshape(N, C, H, W)


def instance_normalization_ref(x, scale, shift, eps=1e-9):
    """Pure-JAX reference matching the PyTorch forward exactly."""
    N, C, H, W = x.shape
    n = H * W
    t = x.reshape(N, C, n)
    mean = jnp.mean(t, axis=2)[:, :, None, None]
    var_unbiased = jnp.var(t, axis=2, ddof=1)[:, :, None, None]
    var = var_unbiased * ((n - 1) / float(n))
    out = (x - mean) / jnp.sqrt(var + eps)
    out = out * scale[None, :, None, None] + shift[None, :, None, None]
    return out


if __name__ == "__main__":
    key = jax.random.PRNGKey(0)
    kx, kscale = jax.random.split(key)

    N, C, H, W = 2, 4, 16, 16
    x = jax.random.normal(kx, (N, C, H, W), dtype=jnp.float32)

    # Deterministic parameter init mirroring the module's _reset_parameters:
    # scale ~ U[0, 1), shift = 0
    scale = jax.random.uniform(kscale, (C,), dtype=jnp.float32)
    shift = jnp.zeros((C,), dtype=jnp.float32)

    out = instance_normalization(x, scale, shift, eps=1e-9)
    out = jax.block_until_ready(out)

    ref = instance_normalization_ref(x, scale, shift, eps=1e-9)
    assert out.shape == (N, C, H, W)
    assert jnp.allclose(out, ref, atol=1e-5, rtol=1e-5), "mismatch vs reference"

    print("KERNEL_OK")
</pallas_src>

<mosaic_0001>
module attributes {stable_mosaic.version = 11 : i64} {
  func.func @_instance_norm_kernel(%arg0: i32, %arg1: memref<8x256xf32, #tpu.memory_space<vmem>>, %arg2: memref<8x1xf32, #tpu.memory_space<vmem>>, %arg3: memref<8x1xf32, #tpu.memory_space<vmem>>, %arg4: memref<8x256xf32, #tpu.memory_space<vmem>>) attributes {dimension_semantics = [#tpu.dimension_semantics<parallel>], iteration_bounds = array<i64: 1>, scalar_prefetch = 0 : i64, scratch_operands = 0 : i64, tpu.core_type = #tpu.core_type<tc>, window_params = [{transform_indices = @transform_0, window_bounds = array<i64: 8, 256>}, {transform_indices = @transform_1, window_bounds = array<i64: 8, 1>}, {transform_indices = @transform_2, window_bounds = array<i64: 8, 1>}, {transform_indices = @transform_3, window_bounds = array<i64: 8, 256>}]} {
    %c0 = arith.constant 0 : index
    %c0_0 = arith.constant 0 : index
    %0 = vector.load %arg1[%c0, %c0_0] : memref<8x256xf32, #tpu.memory_space<vmem>>, vector<8x256xf32>
    %c0_1 = arith.constant 0 : index
    %c0_2 = arith.constant 0 : index
    %1 = vector.load %arg2[%c0_1, %c0_2] : memref<8x1xf32, #tpu.memory_space<vmem>>, vector<8x1xf32>
    %c0_3 = arith.constant 0 : index
    %c0_4 = arith.constant 0 : index
    %2 = vector.load %arg3[%c0_3, %c0_4] : memref<8x1xf32, #tpu.memory_space<vmem>>, vector<8x1xf32>
    %cst = arith.constant dense<0.000000e+00> : vector<8xf32>
    %3 = vector.multi_reduction <add>, %0, %cst [1] : vector<8x256xf32> to vector<8xf32>
    %4 = vector.shape_cast %3 : vector<8xf32> to vector<8x1xf32>
    %5 = arith.mulf %0, %0 : vector<8x256xf32>
    %cst_5 = arith.constant dense<0.000000e+00> : vector<8xf32>
    %6 = vector.multi_reduction <add>, %5, %cst_5 [1] : vector<8x256xf32> to vector<8xf32>
    %7 = vector.shape_cast %6 : vector<8xf32> to vector<8x1xf32>
    %cst_6 = arith.constant 3.906250e-03 : f32
    %8 = vector.broadcast %cst_6 : f32 to vector<8x1xf32>
    %9 = arith.mulf %4, %8 : vector<8x1xf32>
    %cst_7 = arith.constant 3.906250e-03 : f32
    %10 = vector.broadcast %cst_7 : f32 to vector<8x1xf32>
    %11 = arith.mulf %7, %10 : vector<8x1xf32>
    %12 = arith.mulf %9, %9 : vector<8x1xf32>
    %13 = arith.subf %11, %12 : vector<8x1xf32>
    %cst_8 = arith.constant 0.000000e+00 : f32
    %14 = vector.broadcast %cst_8 : f32 to vector<8x1xf32>
    %15 = arith.maximumf %13, %14 : vector<8x1xf32>
    %cst_9 = arith.constant 9.99999971E-10 : f32
    %16 = vector.broadcast %cst_9 : f32 to vector<8x1xf32>
    %17 = arith.addf %15, %16 : vector<8x1xf32>
    %18 = math.rsqrt %17 : vector<8x1xf32>
    %19 = arith.mulf %1, %18 : vector<8x1xf32>
    %20 = arith.mulf %9, %19 : vector<8x1xf32>
    %21 = arith.subf %2, %20 : vector<8x1xf32>
    %22 = vector.broadcast %19 : vector<8x1xf32> to vector<8x256xf32>
    %23 = arith.mulf %0, %22 : vector<8x256xf32>
    %24 = vector.broadcast %21 : vector<8x1xf32> to vector<8x256xf32>
    %25 = arith.addf %23, %24 : vector<8x256xf32>
    %c0_10 = arith.constant 0 : index
    %c0_11 = arith.constant 0 : index
    %26 = vector.load %arg4[%c0_10, %c0_11] : memref<8x256xf32, #tpu.memory_space<vmem>>, vector<8x256xf32>
    tpu.vector_store %arg4[%c0_10, %c0_11], %25 {strides = array<i32>} : memref<8x256xf32, #tpu.memory_space<vmem>>, vector<8x256xf32>,
    return
  }
  func.func @transform_0(%arg0: i32) -> (i32, i32) {
    %c0_i32 = arith.constant 0 : i32
    %c0_i32_0 = arith.constant 0 : i32
    return %arg0, %c0_i32 : i32, i32
  }
  func.func @transform_1(%arg0: i32) -> (i32, i32) {
    %c0_i32 = arith.constant 0 : i32
    %c0_i32_0 = arith.constant 0 : i32
    return %arg0, %c0_i32 : i32, i32
  }
  func.func @transform_2(%arg0: i32) -> (i32, i32) {
    %c0_i32 = arith.constant 0 : i32
    %c0_i32_0 = arith.constant 0 : i32
    return %arg0, %c0_i32 : i32, i32
  }
  func.func @transform_3(%arg0: i32) -> (i32, i32) {
    %c0_i32 = arith.constant 0 : i32
    %c0_i32_0 = arith.constant 0 : i32
    return %arg0, %c0_i32 : i32, i32
  }
}

</mosaic_0001>

<llo_original>
// kernel: tpu_custom_call.1
$region0: #{tpu_custom_call.1}
  #allocation0 [shape = 'u32[]', space=smem, size = 0x4, offset = 0x4, fixed_abs, tag = 'smem constant byte address 0x4 - core index']
  #allocation1 [shape = 'u32[144,128]{1,0:T(1,128)}', space=vmem, size = 0x12000, scoped, tag = 'internal scratch']
  %s0 = inlined_call_operand.vmem [shape: f32[8,256], index: 0, kind: input, shape index: {}]
  %s1 = inlined_call_operand.vmem [shape: f32[8,1], index: 1, kind: input, shape index: {}]
  %s2 = inlined_call_operand.vmem [shape: f32[8,1], index: 2, kind: input, shape index: {}]
  %s3 = inlined_call_operand.hbm [shape: f32[8,256], index: 3, kind: output, shape index: {}]
  %s4 = sld [smem:[#allocation0]]
  $region22: #{tpu_custom_call.1} parent=0
    _
  %s6 = ssub.s32 1, %s4
  %s7 = scalar_select 0, %s6, %s4
  $region1: #{tpu_custom_call.1} parent=0
    #allocation2 [shape = 'u8[8192]{0}', space=vmem, size = 0x2000, scoped, tag = 'output window, operand 0, single buffered']
    #allocation3 [shape = 's32[1]{0}', space=sflag, size = 0x4, scoped, tag = 'scoped memory for tpu_custom_call.1']
    %8 = vsyncpa [#allocation3], 0
    // Predicated region
    $region2: #{tpu_custom_call.1} parent=1 // pred_check
      _
    $region3: #{tpu_custom_call.1} parent=1 // pred_check_branch
      %10 = sbr.rel (0) target = $region5
    $region4: #{tpu_custom_call.1} parent=1 // pred_region
      _
    $region5: #{tpu_custom_call.1} parent=1 // pred_fallthru
      _
    // Predicated region
    $region6: #{tpu_custom_call.1} parent=1 // pred_check
      _
    $region7: #{tpu_custom_call.1} parent=1 // pred_check_branch
      %12 = sbr.rel (0) target = $region9
    $region8: #{tpu_custom_call.1} parent=1 // pred_region
      _
    $region9: #{tpu_custom_call.1} parent=1 // pred_fallthru
      _
    // Predicated region
    $region10: #{tpu_custom_call.1} parent=1 // pred_check
      _
    $region11: #{tpu_custom_call.1} parent=1 // pred_check_branch
      %14 = sbr.rel (0) target = $region13
    $region12: #{tpu_custom_call.1} parent=1 // pred_region
      _
    $region13: #{tpu_custom_call.1} parent=1 // pred_fallthru
      _
    %v15 = vld [vmem:[%s0] sm:$0xff]
    %v16 = vld [vmem:[%s0 + $0x8] sm:$0xff]
    %v17 = vld [vmem:[%s1] sm:$0xff]
    %v18 = vld [vmem:[%s2] sm:$0xff]
    %v19 = vadd.f32 %v15, %v16
    %20 = vadd.xlane.f32.xlu0 %v19
    %v21 = vpop.xlane.xlu0 %20
    %v22 = vmul.f32 %v15, %v15
    %v23 = vmul.f32 %v16, %v16
    %v24 = vadd.f32 %v22, %v23
    %25 = vadd.xlane.f32.xlu0 %v24
    %v26 = vpop.xlane.xlu0 %25
    %v27 = vmul.f32 %v21, 0.00390625
    %v28 = vmul.f32 %v26, 0.00390625
    %v29 = vmul.f32 %v27, %v27
    %v30 = vsub.f32 %v28, %v29
    %v31 = vmax.f32 %v30, 0.0
    %v32 = vadd.f32 %v31, 1e-09
    %v33 = vrsqrt.pop %v32
    %v34 = vmul.f32 %v17, %v33
    %v35 = vmul.f32 %v27, %v34
    %v36 = vsub.f32 %v18, %v35
    %38 = vset.pattern.permute.xlu0 0
    %39 = vperm.xlu0 %38, %v34
    %v40 = vpop.permute.xlu0 %39
    %v42 = vmul.f32 %v15, %v40
    %v43 = vmul.f32 %v16, %v40
    %45 = vset.pattern.permute.xlu0 0
    %46 = vperm.xlu0 %45, %v36
    %v47 = vpop.permute.xlu0 %46
    %v49 = vadd.f32 %v42, %v47
    %v50 = vadd.f32 %v43, %v47
    %51 = vst [vmem:[#allocation2] sm:$0xff] %v49
    %52 = vst [vmem:[#allocation2 + $0x8] sm:$0xff] %v50
    // Predicated region
    $region14: #{tpu_custom_call.1} parent=1 // pred_check
      _
    $region15: #{tpu_custom_call.1} parent=1 // pred_check_branch
      %54 = sbr.rel (0) target = $region17
    $region16: #{tpu_custom_call.1} parent=1 // pred_region
      %s56 = ssub.s32 256, 256
      %57 = vsyncadd [#allocation3], %s56
      %s59 = sshll.u32 [#allocation2], 4
      %s60 = int_to_ptr.vmem [resolvable:$true] %s59
      %62 = dma.vmem_to_hbm [thread:$0]  %s60, 256, %s3, [#allocation3]
    $region17: #{tpu_custom_call.1} parent=1 // pred_fallthru
      _
    // Predicated region
    $region18: #{tpu_custom_call.1} parent=1 // pred_check
      _
    $region19: #{tpu_custom_call.1} parent=1 // pred_check_branch
      %64 = sbr.rel (0) target = $region21
    $region20: #{tpu_custom_call.1} parent=1 // pred_region
      %65 = dma.done [#allocation3], 256
    $region21: #{tpu_custom_call.1} parent=1 // pred_fallthru
      _
    %66 = vsyncpa [#allocation3], 1

</llo_original>
